<compile_context>
chip_gen: v6e
topology: v6e:2x2x1
jax: 0.10.0
libtpu: 0.0.40
codegen_flags: <defaults>
</compile_context>

<pallas_src>
import functools
import math

import jax
import jax.numpy as jnp
from jax.experimental import pallas as pl
from jax.experimental.pallas import tpu as pltpu

BN_EPS = 1e-5
LANE = 128


def _round_up(n, m):
    return ((n + m - 1) // m) * m


def _leaky_relu(h, slope):
    return jnp.where(h > 0, h, slope * h)


def _softplus(h):
    # PyTorch Softplus (beta=1, threshold=20)
    return jnp.where(h > 20.0, h, jnp.log1p(jnp.exp(jnp.minimum(h, 20.0))))


def _fold_bn(w, b, gamma, beta, rmean, rvar):
    # Fold eval-mode BatchNorm1d into the preceding Linear:
    #   y = ((x@w + b) - rm) * g/sqrt(rv+eps) + beta = x@(w*s) + ((b-rm)*s + beta)
    s = gamma * jax.lax.rsqrt(rvar + BN_EPS)
    return w * s, (b - rmean) * s + beta


def _pad_cols(a, cols):
    pad = cols - a.shape[-1]
    if pad == 0:
        return a
    return jnp.pad(a, [(0, 0)] * (a.ndim - 1) + [(0, pad)])


# ---------------------------------------------------------------------------
# Kernels
# ---------------------------------------------------------------------------
def retrieval_kernel(x_ref,
                     w1_ref, b1_ref, w2_ref, b2_ref,
                     w3_ref, b3_ref, w4_ref, b4_ref,
                     o_ref):
    cdt = w1_ref.dtype  # dot operand dtype (f32 or bf16); accumulation is f32
    x = x_ref[...].astype(cdt)          # in-kernel cast, hides under first dot

    h = jnp.dot(x, w1_ref[...], preferred_element_type=jnp.float32) + b1_ref[...]
    h = _leaky_relu(h, 0.01)            # BN folded into w1/b1; Dropout = identity

    h = jnp.dot(h.astype(cdt), w2_ref[...],
                preferred_element_type=jnp.float32) + b2_ref[...]
    h = _leaky_relu(h, 0.01)            # BN folded into w2/b2; Dropout = identity

    h = jnp.dot(h.astype(cdt), w3_ref[...],
                preferred_element_type=jnp.float32) + b3_ref[...]
    h = jnp.maximum(h, 0.0)

    # w4/b4 are zero-padded to a 128-lane multiple -> padded lanes are exactly
    # 0 and do not perturb the L2 norm; the wrapper slices them off.
    h = jnp.dot(h.astype(cdt), w4_ref[...],
                preferred_element_type=jnp.float32) + b4_ref[...]

    inv = jax.lax.rsqrt(jnp.sum(h * h, axis=-1, keepdims=True) + 1e-12)
    o_ref[...] = (h * inv).astype(o_ref.dtype)


def generative_kernel(x_ref,
                      w1_ref, b1_ref, w2_ref, b2_ref,
                      wh_ref, bh_ref,
                      o_ref, *, latent_d):
    cdt = w1_ref.dtype
    x = x_ref[...].astype(cdt)

    h = jnp.dot(x, w1_ref[...], preferred_element_type=jnp.float32) + b1_ref[...]
    h = _leaky_relu(h, 0.2)             # BN folded; Dropout(0.25) = identity

    h = jnp.dot(h.astype(cdt), w2_ref[...],
                preferred_element_type=jnp.float32) + b2_ref[...]
    h = _leaky_relu(h, 0.2)             # BN folded

    # Fused mu|sigma head, zero-padded to a 128-lane multiple -> one dense slab.
    head = jnp.dot(h.astype(cdt), wh_ref[...],
                   preferred_element_type=jnp.float32) + bh_ref[...]
    lane = jax.lax.broadcasted_iota(jnp.int32, head.shape, 1)
    out = jnp.where(lane < latent_d, head, _softplus(head))
    o_ref[...] = out.astype(o_ref.dtype)


# ---------------------------------------------------------------------------
# pallas_call wrapper
# ---------------------------------------------------------------------------
def _pick_tile_b(batch, tile_b):
    if batch <= 8:
        return batch                       # one tiny full block (legal: == dim)
    # Aim for >= 2 grid steps so the "parallel" batch axis can be sharded over
    # both TensorCores on v7x; keep the sublane dim a multiple of 8.
    half = -(-batch // 2)                  # cdiv(batch, 2)
    tb = min(int(tile_b), half)
    return max(8, _round_up(tb, 8))


def _vmem_limit_bytes(tb, feat, out_cols, params):
    param_bytes = sum(math.prod(p.shape) * p.dtype.itemsize for p in params)
    widths = [int(p.shape[-1]) for p in params] + [int(feat), int(out_cols)]
    act_bytes = tb * max(widths) * 4       # one f32 activation tile
    est = (2 * tb * feat * 4               # double-buffered x blocks (f32)
           + 2 * tb * out_cols * 4         # double-buffered out blocks
           + 2 * param_bytes               # resident weights (2 pipeline bufs)
           + 6 * act_bytes                 # live f32 activations / temporaries
           + (2 << 20))                    # compiler-internal scratch slack
    # Never below the default scoped limit; never above v7x's 64 MiB physical.
    return int(min(max(est, 32 << 20), 64 << 20))


def _pallas_mlp_call(kernel, x, params, out_cols, tile_b, out_dtype):
    B, F = x.shape
    tb = _pick_tile_b(B, tile_b)
    grid = (pl.cdiv(B, tb),)

    x_spec = pl.BlockSpec((tb, F), lambda i: (i, 0))
    # Weights/biases: full block, constant index_map -> VMEM-resident.
    p_specs = [pl.BlockSpec(p.shape, lambda i: (0, 0)) for p in params]
    out_spec = pl.BlockSpec((tb, out_cols), lambda i: (i, 0))

    return pl.pallas_call(
        kernel,
        out_shape=jax.ShapeDtypeStruct((B, out_cols), out_dtype),
        grid=grid,
        in_specs=[x_spec] + p_specs,
        out_specs=out_spec,
        compiler_params=pltpu.CompilerParams(
            dimension_semantics=("parallel",),
            vmem_limit_bytes=_vmem_limit_bytes(tb, F, out_cols, params)),
    )(x, *params)


# ---------------------------------------------------------------------------
# One-time parameter preparation (fold BN, fuse heads, pad to 128 lanes, cast)
# ---------------------------------------------------------------------------
def prepare_retrieval_params(raw_params, compute_dtype=jnp.bfloat16):
    (w1, b1, g1, be1, rm1, rv1,
     w2, b2, g2, be2, rm2, rv2, w3, b3, w4, b4) = raw_params
    w1f, b1f = _fold_bn(w1, b1, g1, be1, rm1, rv1)
    w2f, b2f = _fold_bn(w2, b2, g2, be2, rm2, rv2)
    latent_d = int(w4.shape[1])
    out_cols = _round_up(latent_d, LANE)
    w4p, b4p = _pad_cols(w4, out_cols), _pad_cols(b4, out_cols)
    weights = (w1f.astype(compute_dtype), b1f.astype(jnp.float32),
               w2f.astype(compute_dtype), b2f.astype(jnp.float32),
               w3.astype(compute_dtype), b3.astype(jnp.float32),
               w4p.astype(compute_dtype), b4p.astype(jnp.float32))
    return {"weights": weights, "latent_d": latent_d, "out_cols": out_cols}


def prepare_generative_params(raw_params, compute_dtype=jnp.bfloat16):
    (w1, b1, g1, be1, rm1, rv1,
     w2, b2, g2, be2, rm2, rv2, wmu, bmu, wsg, bsg) = raw_params
    w1f, b1f = _fold_bn(w1, b1, g1, be1, rm1, rv1)
    w2f, b2f = _fold_bn(w2, b2, g2, be2, rm2, rv2)
    latent_d = int(wmu.shape[1])
    out_cols = _round_up(2 * latent_d, LANE)
    wh = _pad_cols(jnp.concatenate([wmu, wsg], axis=1), out_cols)
    bh = _pad_cols(jnp.concatenate([bmu, bsg], axis=1), out_cols)
    weights = (w1f.astype(compute_dtype), b1f.astype(jnp.float32),
               w2f.astype(compute_dtype), b2f.astype(jnp.float32),
               wh.astype(compute_dtype), bh.astype(jnp.float32))
    return {"weights": weights, "latent_d": latent_d, "out_cols": out_cols}


# ---------------------------------------------------------------------------
# Forward wrappers (no per-call weight work; wrap in jax.jit in production)
# ---------------------------------------------------------------------------
def pose_encoder_retrieval(pose, prepared, *, tile_b=2048, out_dtype=jnp.float32):
    B = pose.shape[0]
    x = pose.reshape(B, -1)                    # stays f32; cast happens in-kernel
    out = _pallas_mlp_call(retrieval_kernel, x, prepared["weights"],
                           prepared["out_cols"], tile_b, out_dtype)
    return out[:, :prepared["latent_d"]]


def pose_encoder_generative(pose, prepared, *, tile_b=2048, out_dtype=jnp.float32):
    B = pose.shape[0]
    x = pose.reshape(B, -1)
    L = prepared["latent_d"]
    kernel = functools.partial(generative_kernel, latent_d=L)
    out = _pallas_mlp_call(kernel, x, prepared["weights"],
                           prepared["out_cols"], tile_b, out_dtype)
    # TODO(synk): torch.distributions.Normal object itself has no Pallas
    # equivalent; we return its (loc, scale) tensors.
    return out[:, :L], out[:, L:2 * L]


# ---------------------------------------------------------------------------
# Deterministic parameter construction + pure-JAX references (PyTorch eval
# semantics, f32) for checking
# ---------------------------------------------------------------------------
def _linear(key, fan_in, fan_out):
    kw, kb = jax.random.split(key)
    w = jax.random.normal(kw, (fan_in, fan_out), jnp.float32) * 0.05
    b = jax.random.normal(kb, (1, fan_out), jnp.float32) * 0.05
    return w, b


def _bn_params(key, n):
    kg, kb, km, kv = jax.random.split(key, 4)
    gamma = 1.0 + 0.1 * jax.random.normal(kg, (1, n), jnp.float32)
    beta = 0.1 * jax.random.normal(kb, (1, n), jnp.float32)
    rmean = 0.1 * jax.random.normal(km, (1, n), jnp.float32)
    rvar = 1.0 + 0.1 * jax.random.uniform(kv, (1, n), jnp.float32)
    return gamma, beta, rmean, rvar


def make_retrieval_params(key, input_dim, num_neurons, num_neurons_mini, latentD):
    ks = jax.random.split(key, 6)
    w1, b1 = _linear(ks[0], input_dim, num_neurons)
    g1, be1, rm1, rv1 = _bn_params(ks[1], num_neurons)
    w2, b2 = _linear(ks[2], num_neurons, num_neurons)
    g2, be2, rm2, rv2 = _bn_params(ks[3], num_neurons)
    w3, b3 = _linear(ks[4], num_neurons, num_neurons_mini)
    w4, b4 = _linear(ks[5], num_neurons_mini, latentD)
    return [w1, b1, g1, be1, rm1, rv1,
            w2, b2, g2, be2, rm2, rv2,
            w3, b3, w4, b4]


def make_generative_params(key, input_dim, num_neurons, latentD):
    ks = jax.random.split(key, 6)
    w1, b1 = _linear(ks[0], input_dim, num_neurons)
    g1, be1, rm1, rv1 = _bn_params(ks[1], num_neurons)
    w2, b2 = _linear(ks[2], num_neurons, num_neurons)
    g2, be2, rm2, rv2 = _bn_params(ks[3], num_neurons)
    wmu, bmu = _linear(ks[4], num_neurons, latentD)
    wsg, bsg = _linear(ks[5], num_neurons, latentD)
    return [w1, b1, g1, be1, rm1, rv1,
            w2, b2, g2, be2, rm2, rv2,
            wmu, bmu, wsg, bsg]


def _bn_eval(h, gamma, beta, rmean, rvar):
    return (h - rmean) * jax.lax.rsqrt(rvar + BN_EPS) * gamma + beta


def retrieval_ref(pose, p):
    (w1, b1, g1, be1, rm1, rv1,
     w2, b2, g2, be2, rm2, rv2, w3, b3, w4, b4) = p
    x = pose.reshape(pose.shape[0], -1).astype(jnp.float32)
    h = _leaky_relu(_bn_eval(x @ w1 + b1, g1, be1, rm1, rv1), 0.01)
    h = _leaky_relu(_bn_eval(h @ w2 + b2, g2, be2, rm2, rv2), 0.01)
    h = jnp.maximum(h @ w3 + b3, 0.0)
    h = h @ w4 + b4
    return h / jnp.linalg.norm(h, axis=-1, keepdims=True)


def generative_ref(pose, p):
    (w1, b1, g1, be1, rm1, rv1,
     w2, b2, g2, be2, rm2, rv2, wmu, bmu, wsg, bsg) = p
    x = pose.reshape(pose.shape[0], -1).astype(jnp.float32)
    h = _leaky_relu(_bn_eval(x @ w1 + b1, g1, be1, rm1, rv1), 0.2)
    h = _leaky_relu(_bn_eval(h @ w2 + b2, g2, be2, rm2, rv2), 0.2)
    return h @ wmu + bmu, _softplus(h @ wsg + bsg)


if __name__ == "__main__":
    # Small config consistent with the module: NB_INPUT_JOINTS=8 -> input_dim=24.
    B, J = 4, 8
    input_dim = J * 3
    num_neurons, num_neurons_mini, latentD = 32, 16, 32

    key = jax.random.PRNGKey(0)
    k_pose, k_ret, k_gen = jax.random.split(key, 3)
    pose = jax.random.normal(k_pose, (B, J, 3), jnp.float32)

    ret_params = make_retrieval_params(k_ret, input_dim, num_neurons,
                                       num_neurons_mini, latentD)
    gen_params = make_generative_params(k_gen, input_dim, num_neurons, latentD)

    # One-time prep (BN fold, head fusion, 128-lane output padding, casts).
    ret_f32 = prepare_retrieval_params(ret_params, compute_dtype=jnp.float32)
    gen_f32 = prepare_generative_params(gen_params, compute_dtype=jnp.float32)
    ret_bf16 = prepare_retrieval_params(ret_params, compute_dtype=jnp.bfloat16)
    gen_bf16 = prepare_generative_params(gen_params, compute_dtype=jnp.bfloat16)

    # --- f32-operand path: strict match against PyTorch eval semantics -------
    out_ret = jax.block_until_ready(pose_encoder_retrieval(pose, ret_f32))
    ref_ret = retrieval_ref(pose, ret_params)
    assert out_ret.shape == (B, latentD)
    assert jnp.allclose(out_ret, ref_ret, atol=1e-4, rtol=1e-4)

    mu, sigma = jax.block_until_ready(pose_encoder_generative(pose, gen_f32))
    ref_mu, ref_sg = generative_ref(pose, gen_params)
    assert mu.shape == (B, latentD) and sigma.shape == (B, latentD)
    assert jnp.allclose(mu, ref_mu, atol=1e-4, rtol=1e-4)
    assert jnp.allclose(sigma, ref_sg, atol=1e-4, rtol=1e-4)
    assert bool(jnp.all(sigma > 0))

    # --- bf16-at-the-dot path (MXU-native on v6e/v7x), f32 accumulation ------
    out_ret_bf16 = jax.block_until_ready(pose_encoder_retrieval(pose, ret_bf16))
    assert jnp.allclose(out_ret_bf16, ref_ret, atol=3e-2, rtol=3e-2)

    mu16, sg16 = jax.block_until_ready(pose_encoder_generative(pose, gen_bf16))
    assert jnp.allclose(mu16, ref_mu, atol=3e-2, rtol=3e-2)
    assert jnp.allclose(sg16, ref_sg, atol=3e-2, rtol=3e-2)

    # --- multi-step batch grid ------------------------------------------------
    B2 = 24
    pose2 = jax.random.normal(jax.random.PRNGKey(1), (B2, J, 3), jnp.float32)
    ref2 = retrieval_ref(pose2, ret_params)
    # Default tile_b: batch is auto-split into >=2 steps (16 + 8 tail) for v7x.
    out2 = jax.block_until_ready(pose_encoder_retrieval(pose2, ret_f32))
    assert out2.shape == (B2, latentD)
    assert jnp.allclose(out2, ref2, atol=1e-4, rtol=1e-4)
    # Explicit small tile: 3 full tiles of 8 rows.
    out3 = jax.block_until_ready(
        pose_encoder_retrieval(pose2, ret_f32, tile_b=8))
    assert jnp.allclose(out3, ref2, atol=1e-4, rtol=1e-4)

    print("KERNEL_OK")
</pallas_src>

<mosaic_0001>
module attributes {stable_mosaic.version = 11 : i64} {
  func.func @retrieval_kernel(%arg0: i32, %arg1: memref<4x24xf32, #tpu.memory_space<vmem>>, %arg2: memref<24x32xf32, #tpu.memory_space<vmem>>, %arg3: memref<1x32xf32, #tpu.memory_space<vmem>>, %arg4: memref<32x32xf32, #tpu.memory_space<vmem>>, %arg5: memref<1x32xf32, #tpu.memory_space<vmem>>, %arg6: memref<32x16xf32, #tpu.memory_space<vmem>>, %arg7: memref<1x16xf32, #tpu.memory_space<vmem>>, %arg8: memref<16x128xf32, #tpu.memory_space<vmem>>, %arg9: memref<1x128xf32, #tpu.memory_space<vmem>>, %arg10: memref<4x128xf32, #tpu.memory_space<vmem>>) attributes {dimension_semantics = [#tpu.dimension_semantics<parallel>], iteration_bounds = array<i64: 1>, scalar_prefetch = 0 : i64, scratch_operands = 0 : i64, tpu.core_type = #tpu.core_type<tc>, window_params = [{transform_indices = @transform_0, window_bounds = array<i64: 4, 24>}, {pipeline_mode = #tpu.pipeline_mode<synchronous>, transform_indices = @transform_1, window_bounds = array<i64: 24, 32>}, {pipeline_mode = #tpu.pipeline_mode<synchronous>, transform_indices = @transform_2, window_bounds = array<i64: 1, 32>}, {pipeline_mode = #tpu.pipeline_mode<synchronous>, transform_indices = @transform_3, window_bounds = array<i64: 32, 32>}, {pipeline_mode = #tpu.pipeline_mode<synchronous>, transform_indices = @transform_4, window_bounds = array<i64: 1, 32>}, {pipeline_mode = #tpu.pipeline_mode<synchronous>, transform_indices = @transform_5, window_bounds = array<i64: 32, 16>}, {pipeline_mode = #tpu.pipeline_mode<synchronous>, transform_indices = @transform_6, window_bounds = array<i64: 1, 16>}, {pipeline_mode = #tpu.pipeline_mode<synchronous>, transform_indices = @transform_7, window_bounds = array<i64: 16, 128>}, {pipeline_mode = #tpu.pipeline_mode<synchronous>, transform_indices = @transform_8, window_bounds = array<i64: 1, 128>}, {transform_indices = @transform_9, window_bounds = array<i64: 4, 128>}]} {
    %c0 = arith.constant 0 : index
    %c0_0 = arith.constant 0 : index
    %0 = vector.load %arg1[%c0, %c0_0] : memref<4x24xf32, #tpu.memory_space<vmem>>, vector<4x24xf32>
    %c0_1 = arith.constant 0 : index
    %c0_2 = arith.constant 0 : index
    %1 = vector.load %arg2[%c0_1, %c0_2] : memref<24x32xf32, #tpu.memory_space<vmem>>, vector<24x32xf32>
    %cst = arith.constant dense<0.000000e+00> : vector<4x32xf32>
    %2 = tpu.matmul %0, %1, %cst {dimension_numbers = #tpu.dot_dimension_numbers<[1], [0], [0], [1], [0, 0, 1, 1], [], []>} : vector<4x24xf32>, vector<24x32xf32>, vector<4x32xf32> -> vector<4x32xf32>
    %c0_3 = arith.constant 0 : index
    %c0_4 = arith.constant 0 : index
    %3 = vector.load %arg3[%c0_3, %c0_4] : memref<1x32xf32, #tpu.memory_space<vmem>>, vector<1x32xf32>
    %4 = vector.broadcast %3 : vector<1x32xf32> to vector<4x32xf32>
    %5 = arith.addf %2, %4 : vector<4x32xf32>
    %cst_5 = arith.constant 0.000000e+00 : f32
    %6 = vector.broadcast %cst_5 : f32 to vector<4x32xf32>
    %7 = arith.cmpf ogt, %5, %6 : vector<4x32xf32>
    %cst_6 = arith.constant 0.00999999977 : f32
    %8 = vector.broadcast %cst_6 : f32 to vector<4x32xf32>
    %9 = arith.mulf %8, %5 : vector<4x32xf32>
    %10 = arith.select %7, %5, %9 : vector<4x32xi1>, vector<4x32xf32>
    %c0_7 = arith.constant 0 : index
    %c0_8 = arith.constant 0 : index
    %11 = vector.load %arg4[%c0_7, %c0_8] : memref<32x32xf32, #tpu.memory_space<vmem>>, vector<32x32xf32>
    %cst_9 = arith.constant dense<0.000000e+00> : vector<4x32xf32>
    %12 = tpu.matmul %10, %11, %cst_9 {dimension_numbers = #tpu.dot_dimension_numbers<[1], [0], [0], [1], [0, 0, 1, 1], [], []>} : vector<4x32xf32>, vector<32x32xf32>, vector<4x32xf32> -> vector<4x32xf32>
    %c0_10 = arith.constant 0 : index
    %c0_11 = arith.constant 0 : index
    %13 = vector.load %arg5[%c0_10, %c0_11] : memref<1x32xf32, #tpu.memory_space<vmem>>, vector<1x32xf32>
    %14 = vector.broadcast %13 : vector<1x32xf32> to vector<4x32xf32>
    %15 = arith.addf %12, %14 : vector<4x32xf32>
    %cst_12 = arith.constant 0.000000e+00 : f32
    %16 = vector.broadcast %cst_12 : f32 to vector<4x32xf32>
    %17 = arith.cmpf ogt, %15, %16 : vector<4x32xf32>
    %cst_13 = arith.constant 0.00999999977 : f32
    %18 = vector.broadcast %cst_13 : f32 to vector<4x32xf32>
    %19 = arith.mulf %18, %15 : vector<4x32xf32>
    %20 = arith.select %17, %15, %19 : vector<4x32xi1>, vector<4x32xf32>
    %c0_14 = arith.constant 0 : index
    %c0_15 = arith.constant 0 : index
    %21 = vector.load %arg6[%c0_14, %c0_15] : memref<32x16xf32, #tpu.memory_space<vmem>>, vector<32x16xf32>
    %cst_16 = arith.constant dense<0.000000e+00> : vector<4x16xf32>
    %22 = tpu.matmul %20, %21, %cst_16 {dimension_numbers = #tpu.dot_dimension_numbers<[1], [0], [0], [1], [0, 0, 1, 1], [], []>} : vector<4x32xf32>, vector<32x16xf32>, vector<4x16xf32> -> vector<4x16xf32>
    %c0_17 = arith.constant 0 : index
    %c0_18 = arith.constant 0 : index
    %23 = vector.load %arg7[%c0_17, %c0_18] : memref<1x16xf32, #tpu.memory_space<vmem>>, vector<1x16xf32>
    %24 = vector.broadcast %23 : vector<1x16xf32> to vector<4x16xf32>
    %25 = arith.addf %22, %24 : vector<4x16xf32>
    %cst_19 = arith.constant 0.000000e+00 : f32
    %26 = vector.broadcast %cst_19 : f32 to vector<4x16xf32>
    %27 = arith.maximumf %25, %26 : vector<4x16xf32>
    %c0_20 = arith.constant 0 : index
    %c0_21 = arith.constant 0 : index
    %28 = vector.load %arg8[%c0_20, %c0_21] : memref<16x128xf32, #tpu.memory_space<vmem>>, vector<16x128xf32>
    %cst_22 = arith.constant dense<0.000000e+00> : vector<4x128xf32>
    %29 = tpu.matmul %27, %28, %cst_22 {dimension_numbers = #tpu.dot_dimension_numbers<[1], [0], [0], [1], [0, 0, 1, 1], [], []>} : vector<4x16xf32>, vector<16x128xf32>, vector<4x128xf32> -> vector<4x128xf32>
    %c0_23 = arith.constant 0 : index
    %c0_24 = arith.constant 0 : index
    %30 = vector.load %arg9[%c0_23, %c0_24] : memref<1x128xf32, #tpu.memory_space<vmem>>, vector<1x128xf32>
    %31 = vector.broadcast %30 : vector<1x128xf32> to vector<4x128xf32>
    %32 = arith.addf %29, %31 : vector<4x128xf32>
    %33 = arith.mulf %32, %32 : vector<4x128xf32>
    %cst_25 = arith.constant dense<0.000000e+00> : vector<4xf32>
    %34 = vector.multi_reduction <add>, %33, %cst_25 [1] : vector<4x128xf32> to vector<4xf32>
    %35 = vector.shape_cast %34 : vector<4xf32> to vector<4x1xf32>
    %cst_26 = arith.constant 9.99999996E-13 : f32
    %36 = vector.broadcast %cst_26 : f32 to vector<4x1xf32>
    %37 = arith.addf %35, %36 : vector<4x1xf32>
    %38 = math.rsqrt %37 : vector<4x1xf32>
    %39 = vector.broadcast %38 : vector<4x1xf32> to vector<4x128xf32>
    %40 = arith.mulf %32, %39 : vector<4x128xf32>
    %c0_27 = arith.constant 0 : index
    %c0_28 = arith.constant 0 : index
    %41 = vector.load %arg10[%c0_27, %c0_28] : memref<4x128xf32, #tpu.memory_space<vmem>>, vector<4x128xf32>
    tpu.vector_store %arg10[%c0_27, %c0_28], %40 {strides = array<i32>} : memref<4x128xf32, #tpu.memory_space<vmem>>, vector<4x128xf32>,
    return
  }
  func.func @transform_0(%arg0: i32) -> (i32, i32) {
    %c0_i32 = arith.constant 0 : i32
    %c0_i32_0 = arith.constant 0 : i32
    return %arg0, %c0_i32 : i32, i32
  }
  func.func @transform_1(%arg0: i32) -> (i32, i32) {
    %c0_i32 = arith.constant 0 : i32
    %c0_i32_0 = arith.constant 0 : i32
    %c0_i32_1 = arith.constant 0 : i32
    return %c0_i32, %c0_i32_0 : i32, i32
  }
  func.func @transform_2(%arg0: i32) -> (i32, i32) {
    %c0_i32 = arith.constant 0 : i32
    %c0_i32_0 = arith.constant 0 : i32
    %c0_i32_1 = arith.constant 0 : i32
    return %c0_i32, %c0_i32_0 : i32, i32
  }
  func.func @transform_3(%arg0: i32) -> (i32, i32) {
    %c0_i32 = arith.constant 0 : i32
    %c0_i32_0 = arith.constant 0 : i32
    %c0_i32_1 = arith.constant 0 : i32
    return %c0_i32, %c0_i32_0 : i32, i32
  }
  func.func @transform_4(%arg0: i32) -> (i32, i32) {
    %c0_i32 = arith.constant 0 : i32
    %c0_i32_0 = arith.constant 0 : i32
    %c0_i32_1 = arith.constant 0 : i32
    return %c0_i32, %c0_i32_0 : i32, i32
  }
  func.func @transform_5(%arg0: i32) -> (i32, i32) {
    %c0_i32 = arith.constant 0 : i32
    %c0_i32_0 = arith.constant 0 : i32
    %c0_i32_1 = arith.constant 0 : i32
    return %c0_i32, %c0_i32_0 : i32, i32
  }
  func.func @transform_6(%arg0: i32) -> (i32, i32) {
    %c0_i32 = arith.constant 0 : i32
    %c0_i32_0 = arith.constant 0 : i32
    %c0_i32_1 = arith.constant 0 : i32
    return %c0_i32, %c0_i32_0 : i32, i32
  }
  func.func @transform_7(%arg0: i32) -> (i32, i32) {
    %c0_i32 = arith.constant 0 : i32
    %c0_i32_0 = arith.constant 0 : i32
    %c0_i32_1 = arith.constant 0 : i32
    return %c0_i32, %c0_i32_0 : i32, i32
  }
  func.func @transform_8(%arg0: i32) -> (i32, i32) {
    %c0_i32 = arith.constant 0 : i32
    %c0_i32_0 = arith.constant 0 : i32
    %c0_i32_1 = arith.constant 0 : i32
    return %c0_i32, %c0_i32_0 : i32, i32
  }
  func.func @transform_9(%arg0: i32) -> (i32, i32) {
    %c0_i32 = arith.constant 0 : i32
    %c0_i32_0 = arith.constant 0 : i32
    return %arg0, %c0_i32 : i32, i32
  }
}

</mosaic_0001>

<llo_original>
// kernel: tpu_custom_call.1
$region0: #{tpu_custom_call.1}
  #allocation0 [shape = 'u32[]', space=smem, size = 0x4, offset = 0x4, fixed_abs, tag = 'smem constant byte address 0x4 - core index']
  #allocation1 [shape = 'u32[144,128]{1,0:T(1,128)}', space=vmem, size = 0x12000, scoped, tag = 'internal scratch']
  %s0 = inlined_call_operand.vmem [shape: f32[4,24], index: 0, kind: input, shape index: {}]
  %s1 = inlined_call_operand.hbm [shape: f32[24,32], index: 1, kind: input, shape index: {}]
  %s2 = inlined_call_operand.vmem [shape: f32[1,32], index: 2, kind: input, shape index: {}]
  %s3 = inlined_call_operand.vmem [shape: f32[32,32], index: 3, kind: input, shape index: {}]
  %s4 = inlined_call_operand.vmem [shape: f32[1,32], index: 4, kind: input, shape index: {}]
  %s5 = inlined_call_operand.vmem [shape: f32[32,16], index: 5, kind: input, shape index: {}]
  %s6 = inlined_call_operand.vmem [shape: f32[1,16], index: 6, kind: input, shape index: {}]
  %s7 = inlined_call_operand.vmem [shape: f32[16,128], index: 7, kind: input, shape index: {}]
  %s8 = inlined_call_operand.vmem [shape: f32[1,128], index: 8, kind: input, shape index: {}]
  %s9 = inlined_call_operand.hbm [shape: f32[4,128], index: 9, kind: output, shape index: {}]
  %s10 = sld [smem:[#allocation0]]
  $region50: #{tpu_custom_call.1} parent=0
    _
  %s12 = ssub.s32 1, %s10
  %s13 = scalar_select 0, %s12, %s10
  $region1: #{tpu_custom_call.1} parent=0
    #allocation2 [shape = 'u8[12288]{0}', space=vmem, size = 0x3000, scoped, tag = 'input window, operand 1, single buffered']
    #allocation3 [shape = 's32[1]{0}', space=sflag, size = 0x4, scoped, tag = 'scoped memory for tpu_custom_call.1']
    #allocation4 [shape = 's32[1]{0}', space=sflag, size = 0x4, scoped, tag = 'scoped memory for tpu_custom_call.1']
    #allocation5 [shape = 'u8[2048]{0}', space=vmem, size = 0x800, scoped, tag = 'output window, operand 0, single buffered']
    %14 = vsyncpa [#allocation3], 0
    %15 = vsyncpa [#allocation4], 0
    // Predicated region
    $region2: #{tpu_custom_call.1} parent=1 // pred_check
      _
    $region3: #{tpu_custom_call.1} parent=1 // pred_check_branch
      %17 = sbr.rel (0) target = $region5
    $region4: #{tpu_custom_call.1} parent=1 // pred_region
      _
    $region5: #{tpu_custom_call.1} parent=1 // pred_fallthru
      _
    // Predicated region
    $region6: #{tpu_custom_call.1} parent=1 // pred_check
      _
    $region7: #{tpu_custom_call.1} parent=1 // pred_check_branch
      %19 = sbr.rel (0) target = $region9
    $region8: #{tpu_custom_call.1} parent=1 // pred_region
      %s21 = ssub.s32 384, 384
      %22 = vsyncadd [#allocation3], %s21
      %s23 = sshll.u32 [#allocation2], 4
      %s24 = int_to_ptr.vmem [resolvable:$true] %s23
      %29 = dma.hbm_to_vmem [thread:$0]  %s1, 384, %s24, [#allocation3], 128, 128, 8
    $region9: #{tpu_custom_call.1} parent=1 // pred_fallthru
      _
    // Predicated region
    $region10: #{tpu_custom_call.1} parent=1 // pred_check
      _
    $region11: #{tpu_custom_call.1} parent=1 // pred_check_branch
      %31 = sbr.rel (0) target = $region13
    $region12: #{tpu_custom_call.1} parent=1 // pred_region
      _
    $region13: #{tpu_custom_call.1} parent=1 // pred_fallthru
      _
    // Predicated region
    $region14: #{tpu_custom_call.1} parent=1 // pred_check
      _
    $region15: #{tpu_custom_call.1} parent=1 // pred_check_branch
      %33 = sbr.rel (0) target = $region17
    $region16: #{tpu_custom_call.1} parent=1 // pred_region
      _
    $region17: #{tpu_custom_call.1} parent=1 // pred_fallthru
      _
    // Predicated region
    $region18: #{tpu_custom_call.1} parent=1 // pred_check
      _
    $region19: #{tpu_custom_call.1} parent=1 // pred_check_branch
      %35 = sbr.rel (0) target = $region21
    $region20: #{tpu_custom_call.1} parent=1 // pred_region
      _
    $region21: #{tpu_custom_call.1} parent=1 // pred_fallthru
      _
    // Predicated region
    $region22: #{tpu_custom_call.1} parent=1 // pred_check
      _
    $region23: #{tpu_custom_call.1} parent=1 // pred_check_branch
      %37 = sbr.rel (0) target = $region25
    $region24: #{tpu_custom_call.1} parent=1 // pred_region
      _
    $region25: #{tpu_custom_call.1} parent=1 // pred_fallthru
      _
    // Predicated region
    $region26: #{tpu_custom_call.1} parent=1 // pred_check
      _
    $region27: #{tpu_custom_call.1} parent=1 // pred_check_branch
      %39 = sbr.rel (0) target = $region29
    $region28: #{tpu_custom_call.1} parent=1 // pred_region
      _
    $region29: #{tpu_custom_call.1} parent=1 // pred_fallthru
      _
    // Predicated region
    $region30: #{tpu_custom_call.1} parent=1 // pred_check
      _
    $region31: #{tpu_custom_call.1} parent=1 // pred_check_branch
      %41 = sbr.rel (0) target = $region33
    $region32: #{tpu_custom_call.1} parent=1 // pred_region
      _
    $region33: #{tpu_custom_call.1} parent=1 // pred_fallthru
      _
    // Predicated region
    $region34: #{tpu_custom_call.1} parent=1 // pred_check
      _
    $region35: #{tpu_custom_call.1} parent=1 // pred_check_branch
      %43 = sbr.rel (0) target = $region37
    $region36: #{tpu_custom_call.1} parent=1 // pred_region
      _
    $region37: #{tpu_custom_call.1} parent=1 // pred_fallthru
      _
    // Predicated region
    $region38: #{tpu_custom_call.1} parent=1 // pred_check
      _
    $region39: #{tpu_custom_call.1} parent=1 // pred_check_branch
      %45 = sbr.rel (0) target = $region41
    $region40: #{tpu_custom_call.1} parent=1 // pred_region
      %46 = dma.done [#allocation3], 384
    $region41: #{tpu_custom_call.1} parent=1 // pred_fallthru
      _
    %v47 = vld [vmem:[%s0] sm:$0xf]
    %v48 = vld [vmem:[#allocation2] sm:$0xff]
    %v49 = vld [vmem:[#allocation2 + $0x8] sm:$0xff]
    %v50 = vld [vmem:[#allocation2 + $0x10] sm:$0xff]
    %v51 = vld [vmem:[%s2] sm:$0x1]
    %v53 = vlaneseq
    %v54 = vshrl.u32 %v53, 7
    %v55 = vsub.s32 0, %v54
    %v56 = vrot.slane %v51, %v55
    %vm58 = vcmask 195584
    %v60 = vsel %vm58, %v47, 0
    %62 = vmatprep.subr.mxu0 0.0
    %63 = vmatpush1.msra.mxu0 0.0
    %64 = vmatprep.subr.mxu0 0.0
    %65 = vmatpush1.msra.mxu0 0.0
    %66 = vmatprep.subr.mxu0 0.0
    %67 = vmatpush1.msra.mxu0 0.0
    %68 = vmatprep.subr.mxu0 0.0
    %69 = vmatpush1.msra.mxu0 0.0
    %70 = vmatprep.subr.mxu0 0.0
    %71 = vmatpush1.msra.mxu0 0.0
    %72 = vmatprep.subr.mxu0 0.0
    %73 = vmatpush1.msra.mxu0 0.0
    %74 = vmatprep.subr.mxu0 0.0
    %75 = vmatpush1.msra.mxu0 0.0
    %76 = vmatprep.subr.mxu0 0.0
    %77 = vmatpush1.msra.mxu0 0.0
    %78 = vmatprep.subr.mxu0 0.0
    %79 = vmatpush1.msra.mxu0 0.0
    %80 = vmatprep.subr.mxu0 0.0
    %81 = vmatpush1.msra.mxu0 0.0
    %82 = vmatprep.subr.mxu0 0.0
    %83 = vmatpush1.msra.mxu0 0.0
    %84 = vmatprep.subr.mxu0 0.0
    %85 = vmatpush1.msra.mxu0 0.0
    %86 = vmatprep.subr.mxu0 0.0
    %87 = vmatpush1.msra.mxu0 0.0
    %88 = vmatprep.subr.mxu0 0.0
    %89 = vmatpush1.msra.mxu0 %v50
    %90 = vmatprep.subr.mxu0 0.0
    %91 = vmatpush1.msra.mxu0 %v49
    %92 = vmatprep.subr.mxu0 0.0
    %93 = vmatpush1.msra.mxu0 %v48
    %94 = vmatprep.subr.mxu0 0.0
    %95 = vmatpush2.msra.mxu0 0.0
    %96 = vmatprep.subr.mxu0 0.0
    %97 = vmatpush2.msra.mxu0 0.0
    %98 = vmatprep.subr.mxu0 0.0
    %99 = vmatpush2.msra.mxu0 0.0
    %100 = vmatprep.subr.mxu0 0.0
    %101 = vmatpush2.msra.mxu0 0.0
    %102 = vmatprep.subr.mxu0 0.0
    %103 = vmatpush2.msra.mxu0 0.0
    %104 = vmatprep.subr.mxu0 0.0
    %105 = vmatpush2.msra.mxu0 0.0
    %106 = vmatprep.subr.mxu0 0.0
    %107 = vmatpush2.msra.mxu0 0.0
    %108 = vmatprep.subr.mxu0 0.0
    %109 = vmatpush2.msra.mxu0 0.0
    %110 = vmatprep.subr.mxu0 0.0
    %111 = vmatpush2.msra.mxu0 0.0
    %112 = vmatprep.subr.mxu0 0.0
    %113 = vmatpush2.msra.mxu0 0.0
    %114 = vmatprep.subr.mxu0 0.0
    %115 = vmatpush2.msra.mxu0 0.0
    %116 = vmatprep.subr.mxu0 0.0
    %117 = vmatpush2.msra.mxu0 0.0
    %118 = vmatprep.subr.mxu0 0.0
    %119 = vmatpush2.msra.mxu0 0.0
    %120 = vmatprep.subr.mxu0 0.0
    %121 = vmatpush2.msra.mxu0 0.0
    %122 = vmatprep.subr.mxu0 0.0
    %123 = vmatpush2.msra.mxu0 0.0
    %124 = vmatprep.subr.mxu0 0.0
    %125 = vmatpush2.msra.mxu0 0.0
    %126 = vmatprep.mubr.f32.mxu0 0.0
    %127 = vmatmul.mubr.f32.gmra.mxu0 %v60
    %v128 = vpop.f32.mrf.mxu0
    %v129 = vadd.f32 %v56, %v128
    %v130 = vpop.f32.mrf.mxu0
    %131 = vdwg.mxu0
    %vm132 = vcmp.gt.f32.partialorder %v129, 0.0
    %v133 = vmul.f32 %v129, 0.01
    %v134 = vsel %vm132, %v129, %v133
    %v135 = vld [vmem:[%s3] sm:$0xff]
    %v136 = vld [vmem:[%s3 + $0x8] sm:$0xff]
    %v137 = vld [vmem:[%s3 + $0x10] sm:$0xff]
    %v138 = vld [vmem:[%s3 + $0x18] sm:$0xff]
    %v139 = vld [vmem:[%s4] sm:$0x1]
    %v141 = vlaneseq
    %v142 = vshrl.u32 %v141, 7
    %v143 = vsub.s32 0, %v142
    %v144 = vrot.slane %v139, %v143
    %vm146 = vcmask 261120
    %v148 = vsel %vm146, %v134, 0
    %150 = vmatprep.subr.mxu0 0.0
    %151 = vmatpush1.msra.mxu0 0.0
    %152 = vmatprep.subr.mxu0 0.0
    %153 = vmatpush1.msra.mxu0 0.0
    %154 = vmatprep.subr.mxu0 0.0
    %155 = vmatpush1.msra.mxu0 0.0
    %156 = vmatprep.subr.mxu0 0.0
    %157 = vmatpush1.msra.mxu0 0.0
    %158 = vmatprep.subr.mxu0 0.0
    %159 = vmatpush1.msra.mxu0 0.0
    %160 = vmatprep.subr.mxu0 0.0
    %161 = vmatpush1.msra.mxu0 0.0
    %162 = vmatprep.subr.mxu0 0.0
    %163 = vmatpush1.msra.mxu0 0.0
    %164 = vmatprep.subr.mxu0 0.0
    %165 = vmatpush1.msra.mxu0 0.0
    %166 = vmatprep.subr.mxu0 0.0
    %167 = vmatpush1.msra.mxu0 0.0
    %168 = vmatprep.subr.mxu0 0.0
    %169 = vmatpush1.msra.mxu0 0.0
    %170 = vmatprep.subr.mxu0 0.0
    %171 = vmatpush1.msra.mxu0 0.0
    %172 = vmatprep.subr.mxu0 0.0
    %173 = vmatpush1.msra.mxu0 0.0
    %174 = vmatprep.subr.mxu0 0.0
    %175 = vmatpush1.msra.mxu0 %v138
    %176 = vmatprep.subr.mxu0 0.0
    %177 = vmatpush1.msra.mxu0 %v137
    %178 = vmatprep.subr.mxu0 0.0
    %179 = vmatpush1.msra.mxu0 %v136
    %180 = vmatprep.subr.mxu0 0.0
    %181 = vmatpush1.msra.mxu0 %v135
    %182 = vmatprep.subr.mxu0 0.0
    %183 = vmatpush2.msra.mxu0 0.0
    %184 = vmatprep.subr.mxu0 0.0
    %185 = vmatpush2.msra.mxu0 0.0
    %186 = vmatprep.subr.mxu0 0.0
    %187 = vmatpush2.msra.mxu0 0.0
    %188 = vmatprep.subr.mxu0 0.0
    %189 = vmatpush2.msra.mxu0 0.0
    %190 = vmatprep.subr.mxu0 0.0
    %191 = vmatpush2.msra.mxu0 0.0
    %192 = vmatprep.subr.mxu0 0.0
    %193 = vmatpush2.msra.mxu0 0.0
    %194 = vmatprep.subr.mxu0 0.0
    %195 = vmatpush2.msra.mxu0 0.0
    %196 = vmatprep.subr.mxu0 0.0
    %197 = vmatpush2.msra.mxu0 0.0
    %198 = vmatprep.subr.mxu0 0.0
    %199 = vmatpush2.msra.mxu0 0.0
    %200 = vmatprep.subr.mxu0 0.0
    %201 = vmatpush2.msra.mxu0 0.0
    %202 = vmatprep.subr.mxu0 0.0
    %203 = vmatpush2.msra.mxu0 0.0
    %204 = vmatprep.subr.mxu0 0.0
    %205 = vmatpush2.msra.mxu0 0.0
    %206 = vmatprep.subr.mxu0 0.0
    %207 = vmatpush2.msra.mxu0 0.0
    %208 = vmatprep.subr.mxu0 0.0
    %209 = vmatpush2.msra.mxu0 0.0
    %210 = vmatprep.subr.mxu0 0.0
    %211 = vmatpush2.msra.mxu0 0.0
    %212 = vmatprep.subr.mxu0 0.0
    %213 = vmatpush2.msra.mxu0 0.0
    %214 = vmatprep.mubr.f32.mxu0 0.0
    %215 = vmatmul.mubr.f32.gmra.mxu0 %v148
    %v216 = vpop.f32.mrf.mxu0
    %v217 = vadd.f32 %v144, %v216
    %v218 = vpop.f32.mrf.mxu0
    %219 = vdwg.mxu0
    %vm220 = vcmp.gt.f32.partialorder %v217, 0.0
    %v221 = vmul.f32 %v217, 0.01
    %v222 = vsel %vm220, %v217, %v221
    %v223 = vld [vmem:[%s5] sm:$0xff]
    %v224 = vld [vmem:[%s5 + $0x8] sm:$0xff]
    %v225 = vld [vmem:[%s5 + $0x10] sm:$0xff]
    %v226 = vld [vmem:[%s5 + $0x18] sm:$0xff]
    %v227 = vld [vmem:[%s6] sm:$0x1]
    %v229 = vlaneseq
    %v230 = vshrl.u32 %v229, 7
    %v231 = vsub.s32 0, %v230
    %v232 = vrot.slane %v227, %v231
    %v235 = vsel %vm146, %v222, 0
    %237 = vmatprep.subr.mxu0 0.0
    %238 = vmatpush1.msra.mxu0 0.0
    %239 = vmatprep.subr.mxu0 0.0
    %240 = vmatpush1.msra.mxu0 0.0
    %241 = vmatprep.subr.mxu0 0.0
    %242 = vmatpush1.msra.mxu0 0.0
    %243 = vmatprep.subr.mxu0 0.0
    %244 = vmatpush1.msra.mxu0 0.0
    %245 = vmatprep.subr.mxu0 0.0
    %246 = vmatpush1.msra.mxu0 0.0
    %247 = vmatprep.subr.mxu0 0.0
    %248 = vmatpush1.msra.mxu0 0.0
    %249 = vmatprep.subr.mxu0 0.0
    %250 = vmatpush1.msra.mxu0 0.0
    %251 = vmatprep.subr.mxu0 0.0
    %252 = vmatpush1.msra.mxu0 0.0
    %253 = vmatprep.subr.mxu0 0.0
    %254 = vmatpush1.msra.mxu0 0.0
    %255 = vmatprep.subr.mxu0 0.0
    %256 = vmatpush1.msra.mxu0 0.0
    %257 = vmatprep.subr.mxu0 0.0
    %258 = vmatpush1.msra.mxu0 0.0
    %259 = vmatprep.subr.mxu0 0.0
    %260 = vmatpush1.msra.mxu0 0.0
    %261 = vmatprep.subr.mxu0 0.0
    %262 = vmatpush1.msra.mxu0 %v226
    %263 = vmatprep.subr.mxu0 0.0
    %264 = vmatpush1.msra.mxu0 %v225
    %265 = vmatprep.subr.mxu0 0.0
    %266 = vmatpush1.msra.mxu0 %v224
    %267 = vmatprep.subr.mxu0 0.0
    %268 = vmatpush1.msra.mxu0 %v223
    %269 = vmatprep.subr.mxu0 0.0
    %270 = vmatpush2.msra.mxu0 0.0
    %271 = vmatprep.subr.mxu0 0.0
    %272 = vmatpush2.msra.mxu0 0.0
    %273 = vmatprep.subr.mxu0 0.0
    %274 = vmatpush2.msra.mxu0 0.0
    %275 = vmatprep.subr.mxu0 0.0
    %276 = vmatpush2.msra.mxu0 0.0
    %277 = vmatprep.subr.mxu0 0.0
    %278 = vmatpush2.msra.mxu0 0.0
    %279 = vmatprep.subr.mxu0 0.0
    %280 = vmatpush2.msra.mxu0 0.0
    %281 = vmatprep.subr.mxu0 0.0
    %282 = vmatpush2.msra.mxu0 0.0
    %283 = vmatprep.subr.mxu0 0.0
    %284 = vmatpush2.msra.mxu0 0.0
    %285 = vmatprep.subr.mxu0 0.0
    %286 = vmatpush2.msra.mxu0 0.0
    %287 = vmatprep.subr.mxu0 0.0
    %288 = vmatpush2.msra.mxu0 0.0
    %289 = vmatprep.subr.mxu0 0.0
    %290 = vmatpush2.msra.mxu0 0.0
    %291 = vmatprep.subr.mxu0 0.0
    %292 = vmatpush2.msra.mxu0 0.0
    %293 = vmatprep.subr.mxu0 0.0
    %294 = vmatpush2.msra.mxu0 0.0
    %295 = vmatprep.subr.mxu0 0.0
    %296 = vmatpush2.msra.mxu0 0.0
    %297 = vmatprep.subr.mxu0 0.0
    %298 = vmatpush2.msra.mxu0 0.0
    %299 = vmatprep.subr.mxu0 0.0
    %300 = vmatpush2.msra.mxu0 0.0
    %301 = vmatprep.mubr.f32.mxu0 0.0
    %302 = vmatmul.mubr.f32.gmra.mxu0 %v235
    %v303 = vpop.f32.mrf.mxu0
    %v304 = vadd.f32 %v232, %v303
    %v305 = vpop.f32.mrf.mxu0
    %306 = vdwg.mxu0
    %v307 = vmax.f32 %v304, 0.0
    %v308 = vld [vmem:[%s7] sm:$0xff]
    %v309 = vld [vmem:[%s7 + $0x8] sm:$0xff]
    %v310 = vld [vmem:[%s8] sm:$0x1]
    %v312 = vlaneseq
    %v313 = vshrl.u32 %v312, 7
    %v314 = vsub.s32 0, %v313
    %v315 = vrot.slane %v310, %v314
    %vm317 = vcmask 130048
    %v319 = vsel %vm317, %v307, 0
    %321 = vmatprep.subr.mxu0 0.0
    %322 = vmatpush1.msra.mxu0 0.0
    %323 = vmatprep.subr.mxu0 0.0
    %324 = vmatpush1.msra.mxu0 0.0
    %325 = vmatprep.subr.mxu0 0.0
    %326 = vmatpush1.msra.mxu0 0.0
    %327 = vmatprep.subr.mxu0 0.0
    %328 = vmatpush1.msra.mxu0 0.0
    %329 = vmatprep.subr.mxu0 0.0
    %330 = vmatpush1.msra.mxu0 0.0
    %331 = vmatprep.subr.mxu0 0.0
    %332 = vmatpush1.msra.mxu0 0.0
    %333 = vmatprep.subr.mxu0 0.0
    %334 = vmatpush1.msra.mxu0 0.0
    %335 = vmatprep.subr.mxu0 0.0
    %336 = vmatpush1.msra.mxu0 0.0
    %337 = vmatprep.subr.mxu0 0.0
    %338 = vmatpush1.msra.mxu0 0.0
    %339 = vmatprep.subr.mxu0 0.0
    %340 = vmatpush1.msra.mxu0 0.0
    %341 = vmatprep.subr.mxu0 0.0
    %342 = vmatpush1.msra.mxu0 0.0
    %343 = vmatprep.subr.mxu0 0.0
    %344 = vmatpush1.msra.mxu0 0.0
    %345 = vmatprep.subr.mxu0 0.0
    %346 = vmatpush1.msra.mxu0 0.0
    %347 = vmatprep.subr.mxu0 0.0
    %348 = vmatpush1.msra.mxu0 0.0
    %349 = vmatprep.subr.mxu0 0.0
    %350 = vmatpush1.msra.mxu0 %v309
    %351 = vmatprep.subr.mxu0 0.0
    %352 = vmatpush1.msra.mxu0 %v308
    %353 = vmatprep.subr.mxu0 0.0
    %354 = vmatpush2.msra.mxu0 0.0
    %355 = vmatprep.subr.mxu0 0.0
    %356 = vmatpush2.msra.mxu0 0.0
    %357 = vmatprep.subr.mxu0 0.0
    %358 = vmatpush2.msra.mxu0 0.0
    %359 = vmatprep.subr.mxu0 0.0
    %360 = vmatpush2.msra.mxu0 0.0
    %361 = vmatprep.subr.mxu0 0.0
    %362 = vmatpush2.msra.mxu0 0.0
    %363 = vmatprep.subr.mxu0 0.0
    %364 = vmatpush2.msra.mxu0 0.0
    %365 = vmatprep.subr.mxu0 0.0
    %366 = vmatpush2.msra.mxu0 0.0
    %367 = vmatprep.subr.mxu0 0.0
    %368 = vmatpush2.msra.mxu0 0.0
    %369 = vmatprep.subr.mxu0 0.0
    %370 = vmatpush2.msra.mxu0 0.0
    %371 = vmatprep.subr.mxu0 0.0
    %372 = vmatpush2.msra.mxu0 0.0
    %373 = vmatprep.subr.mxu0 0.0
    %374 = vmatpush2.msra.mxu0 0.0
    %375 = vmatprep.subr.mxu0 0.0
    %376 = vmatpush2.msra.mxu0 0.0
    %377 = vmatprep.subr.mxu0 0.0
    %378 = vmatpush2.msra.mxu0 0.0
    %379 = vmatprep.subr.mxu0 0.0
    %380 = vmatpush2.msra.mxu0 0.0
    %381 = vmatprep.subr.mxu0 0.0
    %382 = vmatpush2.msra.mxu0 0.0
    %383 = vmatprep.subr.mxu0 0.0
    %384 = vmatpush2.msra.mxu0 0.0
    %385 = vmatprep.mubr.f32.mxu0 0.0
    %386 = vmatmul.mubr.f32.gmra.mxu0 %v319
    %v387 = vpop.f32.mrf.mxu0
    %v388 = vadd.f32 %v315, %v387
    %v389 = vpop.f32.mrf.mxu0
    %390 = vdwg.mxu0
    %v391 = vmul.f32 %v388, %v388
    %vm392 = vcmask 1043456
    %v393 = vsel %vm392, %v391, 0.0
    %394 = vadd.xlane.f32.xlu0 %v393
    %v395 = vpop.xlane.xlu0 %394
    %v396 = vadd.f32 %v395, 1e-12
    %v397 = vrsqrt.pop %v396
    %v398 = vmul.f32 %v388, %v397
    %399 = vst [vmem:[#allocation5] sm:$0xf] %v398
    // Predicated region
    $region42: #{tpu_custom_call.1} parent=1 // pred_check
      _
    $region43: #{tpu_custom_call.1} parent=1 // pred_check_branch
      %401 = sbr.rel (0) target = $region45
    $region44: #{tpu_custom_call.1} parent=1 // pred_region
      %s403 = ssub.s32 64, 64
      %404 = vsyncadd [#allocation4], %s403
      %s406 = sshll.u32 [#allocation5], 4
      %s407 = int_to_ptr.vmem [resolvable:$true] %s406
      %409 = dma.vmem_to_hbm [thread:$0]  %s407, 64, %s9, [#allocation4]
    $region45: #{tpu_custom_call.1} parent=1 // pred_fallthru
      _
    // Predicated region
    $region46: #{tpu_custom_call.1} parent=1 // pred_check
      _
    $region47: #{tpu_custom_call.1} parent=1 // pred_check_branch
      %411 = sbr.rel (0) target = $region49
    $region48: #{tpu_custom_call.1} parent=1 // pred_region
      %412 = dma.done [#allocation4], 64
    $region49: #{tpu_custom_call.1} parent=1 // pred_fallthru
      _
    %413 = vsyncpa [#allocation3], 1
    %414 = vsyncpa [#allocation4], 1

</llo_original>
